<compile_context>
chip_gen: v6e
topology: v6e:2x2x1
jax: 0.10.0
libtpu: 0.0.40
codegen_flags: <defaults>
</compile_context>

<pallas_src>
import functools

import jax
import jax.numpy as jnp
from jax import lax
from jax.experimental import pallas as pl
from jax.experimental.pallas import tpu as pltpu

EPS = 1e-5
CELL_KERNEL = 41
EMBEDDING_FACTOR = 19968 // 2   # 9984 = 128 * 78
FC_TILE = 256                   # fc1 output tile (small cold-start DMA, v7x-safe)

CONV_LAYERS = (
    # conv1: full im2col (group == K) with the input BatchNorm folded in.
    dict(name='conv1', dilation=1, pool=3, group=CELL_KERNEL, in_bn='bn0'),
    dict(name='conv2', dilation=2, pool=3, group=8, in_bn=None),
    dict(name='conv3', dilation=2, pool=3, group=8, in_bn=None),
    dict(name='conv4', dilation=2, pool=3, group=8, in_bn=None),
    dict(name='conv5', dilation=2, pool=1, group=8, in_bn=None),
)


def _round_up(x, m):
  return (x + m - 1) // m * m


def _vmem_limit_bytes():
  # ~half of physical VMEM, capped: 48 MiB on v5e/v6e (128 MiB), 32 MiB on v7x (64 MiB).
  try:
    cap = int(pltpu.get_tpu_info().vmem_capacity_bytes)
  except Exception:
    cap = 64 * 1024 * 1024
  return max(24 * 1024 * 1024, min(cap // 2, 48 * 1024 * 1024))


VMEM_LIMIT = _vmem_limit_bytes()


def _probe_fc_dtype():
  """Pick the narrowest weight-streaming dtype whose MXU dot provably works here.

  int8 halves the fc1 weight HBM stream on v5e/v6e (native int MXU); fp8 e4m3
  does the same on v7x (no int path).  The probe compiles and runs a tiny
  representative kernel (2-row LHS, same dot shape class as fc1) and checks
  exactness, falling back to bf16 (always safe / exact for +-1) otherwise.
  """
  def _try(dt, acc_dt):
    def k(a_ref, b_ref, o_ref):
      o_ref[...] = jnp.dot(a_ref[...], b_ref[...],
                           preferred_element_type=acc_dt).astype(jnp.float32)
    a = jnp.where(jnp.arange(2 * 512).reshape(2, 512) % 3 == 0, -1, 1).astype(dt)
    b = jnp.where(jnp.arange(512 * 256).reshape(512, 256) % 5 == 0, -1, 1).astype(dt)
    ref = jnp.dot(a.astype(jnp.float32), b.astype(jnp.float32))
    out = pl.pallas_call(
        k, out_shape=jax.ShapeDtypeStruct((2, 256), jnp.float32))(a, b)
    out = jax.block_until_ready(out)
    return bool(jnp.all(out == ref))

  candidates = [(jnp.int8, jnp.int32)]
  fp8 = getattr(jnp, 'float8_e4m3fn', None)
  if fp8 is not None:
    candidates.append((fp8, jnp.float32))
  for dt, acc in candidates:
    try:
      if _try(dt, acc):
        return dt, acc
    except Exception:
      pass
  return jnp.bfloat16, jnp.float32


def _fold_bn(bn):
  gamma, beta, mean, var = bn
  s = gamma / jnp.sqrt(var + EPS)
  t = beta - mean * s
  return s.astype(jnp.float32), t.astype(jnp.float32)


# -----------------------------------------------------------------------------
# One-time parameter preparation (hoisted out of the per-call forward)
# -----------------------------------------------------------------------------
def _prepare_conv(w, b, bn, input_bn, group):
  """PyTorch (C_out, C_in, K) conv -> grouped-tap bf16 weights + folded BN."""
  C_out, C_in, K = w.shape
  wb = jnp.sign(w).astype(jnp.float32)                      # binarized weights
  bias_eff = b.astype(jnp.float32)
  if input_bn is not None:      # conv is linear: W.(s0*x + t0) = (W*s0).x + W.t0
    s0, t0 = _fold_bn(input_bn)
    bias_eff = bias_eff + jnp.einsum('ock,c->o', wb, t0)
    wb = wb * s0[None, :, None]
  s1, t1 = _fold_bn(bn)
  scale = s1.reshape(1, C_out)
  shift = (s1 * bias_eff + t1).reshape(1, C_out)

  G = group
  Kg = -(-K // G)
  wt = jnp.transpose(wb, (2, 1, 0))                          # (K, C_in, C_out)
  wt = jnp.pad(wt, ((0, Kg * G - K), (0, 0), (0, 0)))
  wg = wt.reshape(Kg, G * C_in, C_out)
  Cg = G * C_in
  Cg_pad = _round_up(Cg, 128)
  if Cg_pad != Cg:
    wg = jnp.pad(wg, ((0, 0), (0, Cg_pad - Cg), (0, 0)))
  return dict(wg=wg.astype(jnp.bfloat16), scale=scale, shift=shift)


def _prepare_fc(fc1_w, fc1_b, bn1, fc2_w, fc2_b, bn2, *, w_dtype):
  H, F_in = fc1_w.shape
  C = fc2_w.shape[0]
  C_pad = _round_up(C, 128)

  w1 = jnp.sign(fc1_w).T.astype(w_dtype)                     # (F_in, H), +-1 exact
  s1, t1 = _fold_bn(bn1)
  scale1 = s1.reshape(1, H)
  shift1 = (s1 * fc1_b.astype(jnp.float32) + t1).reshape(1, H)

  w2 = jnp.sign(fc2_w).T.astype(jnp.bfloat16)                # (H, C) -> (H, C_pad)
  w2 = jnp.pad(w2, ((0, 0), (0, C_pad - C)))
  s2, t2 = _fold_bn(bn2)
  scale2 = jnp.pad(s2, (0, C_pad - C)).reshape(1, C_pad)
  shift2 = jnp.pad(s2 * fc2_b.astype(jnp.float32) + t2, (0, C_pad - C),
                   constant_values=-1e30).reshape(1, C_pad)  # padded logits -> exp()==0
  return dict(w1=w1, scale1=scale1, shift1=shift1,
              w2=w2, scale2=scale2, shift2=shift2)


def prepare_params(params, *, w_dtype):
  """One-time weight preprocessing; call once, outside the per-step forward."""
  prep = {}
  for i, cfg in enumerate(CONV_LAYERS, start=1):
    in_bn = params[cfg['in_bn']] if cfg['in_bn'] else None
    prep[cfg['name']] = _prepare_conv(params[f'conv{i}_w'], params[f'conv{i}_b'],
                                      params[f'bn{i}'], in_bn, group=cfg['group'])
  prep['fc'] = _prepare_fc(params['fc1_w'], params['fc1_b'], params['bn_fc1'],
                           params['fc2_w'], params['fc2_b'], params['bn_fc2'],
                           w_dtype=w_dtype)
  return prep


# -----------------------------------------------------------------------------
# Grouped-tap (im2col-style) activation packing done in the wrapper
# -----------------------------------------------------------------------------
def _group_taps(x, d, G, n_rows):
  """xg[n, l, j*C:(j+1)*C] = x[n, l + j*d, :] for j < G (zero-padded past end)."""
  N, L, C = x.shape
  need = n_rows + (G - 1) * d
  if need > L:
    x = jnp.pad(x, ((0, 0), (0, need - L), (0, 0)))
  cols = [lax.slice_in_dim(x, j * d, j * d + n_rows, axis=1) for j in range(G)]
  return cols[0] if G == 1 else jnp.concatenate(cols, axis=-1)


# -----------------------------------------------------------------------------
# Fused BinarizeConv1d + bias + BatchNorm1d + [MaxPool1d] + sign(Hardtanh)
#
# Reference op order is conv -> BN -> hardtanh -> maxpool, and the NEXT layer
# binarizes its input.  Since max/hardtanh/sign are monotone and BN is applied
# before the pool in BOTH orderings, sign(max(hardtanh(BN(y)))) ==
# sign(max(BN(y))), so pooling the post-BN values and taking sign() once is
# exact regardless of the BN scale sign.  sign(0) == 0 (torch.sign semantics).
# -----------------------------------------------------------------------------
def _make_conv_kernel(Kg, step, pool, mc, chunks):
  """Kg grouped taps, `step` sublanes apart; `mc` conv rows per inner chunk."""

  def _chunk(x_ref, w_ref, off):
    # Clean dot+add chain (epilogue kept outside -> MRB-friendly on v7x).
    acc = jnp.dot(x_ref[pl.ds(off, mc), :], w_ref[0],
                  preferred_element_type=jnp.float32)
    for kg in range(1, Kg):
      o2 = pl.multiple_of(off + kg * step, 8)
      acc = acc + jnp.dot(x_ref[pl.ds(o2, mc), :], w_ref[kg],
                          preferred_element_type=jnp.float32)
    return acc

  if pool == 1:
    def kernel(x_ref, w_ref, s_ref, t_ref, o_ref):
      base = pl.multiple_of(pl.program_id(1) * (chunks * mc), 8)
      s = s_ref[...]
      t = t_ref[...]
      for ci in range(chunks):
        off = pl.multiple_of(base + ci * mc, 8)
        acc = _chunk(x_ref, w_ref, off)
        o_ref[pl.ds(ci * mc, mc), :] = jnp.sign(acc * s + t).astype(o_ref.dtype)
    return kernel

  rows_out = mc // pool

  def kernel(x_ref, w_ref, s_ref, t_ref, o_ref, sg_ref):
    base = pl.multiple_of(pl.program_id(1) * (chunks * mc), 8)
    s = s_ref[...]
    t = t_ref[...]
    for ci in range(chunks):
      off = pl.multiple_of(base + ci * mc, 8)
      acc = _chunk(x_ref, w_ref, off)
      sg_ref[...] = acc * s + t                              # post-BN, pre-sign
      m = sg_ref[pl.ds(0, rows_out, stride=pool), :]         # strided in-VMEM pool
      for r in range(1, pool):
        m = jnp.maximum(m, sg_ref[pl.ds(r, rows_out, stride=pool), :])
      o_ref[pl.ds(ci * rows_out, rows_out), :] = jnp.sign(m).astype(o_ref.dtype)
  return kernel


def conv_block(x, prep, *, k, dilation, pool, group):
  """x: (N, L_in, C_in) bf16-ish; prep: prepared weights.  Returns (N, L_out, C_out) bf16 +-1."""
  N, L_in, C_in = x.shape
  wg, scale, shift = prep['wg'], prep['scale'], prep['shift']
  Kg, Cg_pad, C_out = wg.shape
  G, d = group, dilation
  step = G * d
  L_conv = L_in - d * (k - 1)
  L_out = L_conv // pool if pool > 1 else L_conv

  # --- tiling: 120-row chunks keep the f32 accumulator <=15 vregs (spill-safe);
  #     chunks/grid-step balanced to minimise grid steps, then padding.
  mc = 120 if pool > 1 else min(120, _round_up(max(L_out, 8), 8))
  rows_out = mc // pool
  c_total = -(-L_out // rows_out)
  max_chunks = max(1, 2048 // mc)
  n_t = -(-c_total // max_chunks)
  chunks = -(-c_total // n_t)
  TLP = chunks * rows_out                                    # output rows / grid step
  L_out_pad = n_t * TLP
  conv_rows = L_out_pad * pool
  Lg = conv_rows + (Kg - 1) * step

  # --- grouped (im2col-style) activations, bf16 ---
  Cg = G * C_in
  xg = _group_taps(x.astype(jnp.bfloat16), d, G, Lg)
  if Cg_pad != Cg:
    xg = jnp.pad(xg, ((0, 0), (0, 0), (0, Cg_pad - Cg)))

  kernel = _make_conv_kernel(Kg, step, pool, mc, chunks)
  scratch = [pltpu.VMEM((mc, C_out), jnp.float32)] if pool > 1 else []

  out = pl.pallas_call(
      kernel,
      out_shape=jax.ShapeDtypeStruct((N, L_out_pad, C_out), jnp.bfloat16),
      grid=(N, n_t),
      in_specs=[
          pl.BlockSpec((None, Lg, Cg_pad), lambda n, l: (n, 0, 0)),
          pl.BlockSpec((Kg, Cg_pad, C_out), lambda n, l: (0, 0, 0)),
          pl.BlockSpec((1, C_out), lambda n, l: (0, 0)),
          pl.BlockSpec((1, C_out), lambda n, l: (0, 0)),
      ],
      out_specs=pl.BlockSpec((None, TLP, C_out), lambda n, l: (n, l, 0)),
      scratch_shapes=scratch,
      compiler_params=pltpu.CompilerParams(
          dimension_semantics=("parallel", "parallel"),
          vmem_limit_bytes=VMEM_LIMIT),
  )(xg, wg, scale, shift)
  return out[:, :L_out, :]


# -----------------------------------------------------------------------------
# Fused classifier: fc1 + BN + sign + fc2 + BN + log-softmax in ONE kernel.
# fc1 weight tiles (F_in, FC_TILE) stream across the grid; each step's sign()
# output is immediately contracted with the matching fc2 weight tile and
# accumulated into the resident f32 output block; last step applies BN + LSM.
# -----------------------------------------------------------------------------
def _make_classifier_kernel(acc_dtype):
  def kernel(x_ref, w1_ref, s1_ref, t1_ref, w2_ref, s2_ref, t2_ref, o_ref):
    j = pl.program_id(0)

    @pl.when(j == 0)
    def _():
      o_ref[...] = jnp.zeros_like(o_ref)

    y1 = jnp.dot(x_ref[...], w1_ref[...], preferred_element_type=acc_dtype)
    y1 = y1.astype(jnp.float32) * s1_ref[...] + t1_ref[...]
    h = jnp.sign(y1).astype(jnp.bfloat16)                    # sign(hardtanh(.)) == sign(.)
    o_ref[...] += jnp.dot(h, w2_ref[...], preferred_element_type=jnp.float32)

    @pl.when(j == pl.num_programs(0) - 1)
    def _():
      y2 = o_ref[...] * s2_ref[...] + t2_ref[...]
      m = jnp.max(y2, axis=-1, keepdims=True)
      z = y2 - m
      o_ref[...] = z - jnp.log(jnp.sum(jnp.exp(z), axis=-1, keepdims=True))
  return kernel


def classifier_block(x, prep, *, num_classes, w_dtype, acc_dtype, tile=FC_TILE):
  N, F_in = x.shape
  H = prep['w1'].shape[1]
  C_pad = prep['w2'].shape[1]
  assert H % tile == 0
  n_t = H // tile
  x = x.astype(w_dtype)                                      # +-1/0 exact in int8/fp8/bf16

  out = pl.pallas_call(
      _make_classifier_kernel(acc_dtype),
      out_shape=jax.ShapeDtypeStruct((N, C_pad), jnp.float32),
      grid=(n_t,),
      in_specs=[
          pl.BlockSpec((N, F_in), lambda j: (0, 0)),
          pl.BlockSpec((F_in, tile), lambda j: (0, j)),
          pl.BlockSpec((1, tile), lambda j: (0, j)),
          pl.BlockSpec((1, tile), lambda j: (0, j)),
          pl.BlockSpec((tile, C_pad), lambda j: (j, 0)),
          pl.BlockSpec((1, C_pad), lambda j: (0, 0)),
          pl.BlockSpec((1, C_pad), lambda j: (0, 0)),
      ],
      out_specs=pl.BlockSpec((N, C_pad), lambda j: (0, 0)),
      compiler_params=pltpu.CompilerParams(
          dimension_semantics=("arbitrary",),
          vmem_limit_bytes=VMEM_LIMIT),
  )(x, prep['w1'], prep['scale1'], prep['shift1'],
    prep['w2'], prep['scale2'], prep['shift2'])
  return out[:, :num_classes]


# -----------------------------------------------------------------------------
# Parameters (deterministic synthetic init) and full forward pass
# -----------------------------------------------------------------------------
def _bn_params(key, c):
  k1, k2, k3, k4 = jax.random.split(key, 4)
  gamma = 1.0 + 0.1 * jax.random.normal(k1, (c,), jnp.float32)
  beta = 0.1 * jax.random.normal(k2, (c,), jnp.float32)
  mean = 0.1 * jax.random.normal(k3, (c,), jnp.float32)
  var = jax.random.uniform(k4, (c,), jnp.float32, 0.5, 1.5)
  return (gamma, beta, mean, var)


def _conv_params(key, c_out, c_in, k):
  k1, k2 = jax.random.split(key)
  return (0.1 * jax.random.normal(k1, (c_out, c_in, k), jnp.float32),
          0.1 * jax.random.normal(k2, (c_out,), jnp.float32))


def _linear_params(key, f_out, f_in):
  k1, k2 = jax.random.split(key)
  return (0.1 * jax.random.normal(k1, (f_out, f_in), jnp.float32),
          0.1 * jax.random.normal(k2, (f_out,), jnp.float32))


def init_params(key, num_classes=1000, input_channels=3):
  d1, d2, d3, fc = 64, 128, 128, 2048
  ks = jax.random.split(key, 15)
  p = {}
  p['bn0'] = _bn_params(ks[0], input_channels)
  p['conv1_w'], p['conv1_b'] = _conv_params(ks[1], d1, input_channels, CELL_KERNEL)
  p['bn1'] = _bn_params(ks[2], d1)
  p['conv2_w'], p['conv2_b'] = _conv_params(ks[3], d1, d1, CELL_KERNEL)
  p['bn2'] = _bn_params(ks[4], d1)
  p['conv3_w'], p['conv3_b'] = _conv_params(ks[5], d2, d1, CELL_KERNEL)
  p['bn3'] = _bn_params(ks[6], d2)
  p['conv4_w'], p['conv4_b'] = _conv_params(ks[7], d2, d2, CELL_KERNEL)
  p['bn4'] = _bn_params(ks[8], d2)
  p['conv5_w'], p['conv5_b'] = _conv_params(ks[9], d3, d2, CELL_KERNEL)
  p['bn5'] = _bn_params(ks[10], d3)
  p['fc1_w'], p['fc1_b'] = _linear_params(ks[11], fc, EMBEDDING_FACTOR)
  p['bn_fc1'] = _bn_params(ks[12], fc)
  p['fc2_w'], p['fc2_b'] = _linear_params(ks[13], num_classes, fc)
  p['bn_fc2'] = _bn_params(ks[14], num_classes)
  return p


def alexnet_owt_bn_forward(prepared, x_ncl, *, num_classes, w_dtype, acc_dtype):
  """x_ncl: (N, C_in, L) like the PyTorch module.  Returns (N, num_classes) log-probs."""
  x = jnp.transpose(x_ncl, (0, 2, 1))                        # -> (N, L, C)

  # TODO(synk): conv1's input is NOT binarized (standard BinarizeConv skips
  # input binarization for 3-channel inputs); bn0 is folded into conv1.
  for cfg in CONV_LAYERS:
    x = conv_block(x, prepared[cfg['name']], k=CELL_KERNEL,
                   dilation=cfg['dilation'], pool=cfg['pool'], group=cfg['group'])

  # x.view(-1, embedding_factor): PyTorch flattens contiguous (N, C, L)
  x = jnp.transpose(x, (0, 2, 1)).reshape(x.shape[0], EMBEDDING_FACTOR)

  return classifier_block(x, prepared['fc'], num_classes=num_classes,
                          w_dtype=w_dtype, acc_dtype=acc_dtype)


def _feature_len(L):
  L = L - 40          # conv1: k=41, dilation=1
  L = L // 3          # maxpool(3)
  for _ in range(3):  # conv2..conv4: k=41, dilation=2 (+pool)
    L = L - 80
    L = L // 3
  L = L - 80          # conv5
  return L


if __name__ == "__main__":
  num_classes = 1000
  input_channels = 3
  batch = 2
  # Input length implied by the model: features must flatten to 9984 = 128*78.
  seq_len = 15958
  assert 128 * _feature_len(seq_len) == EMBEDDING_FACTOR

  key = jax.random.PRNGKey(0)
  k_x, k_p = jax.random.split(key)
  x = jax.random.normal(k_x, (batch, input_channels, seq_len), jnp.float32)
  params = init_params(k_p, num_classes=num_classes, input_channels=input_channels)

  # Pick the fc weight-streaming dtype the local MXU actually supports.
  fc_dtype, fc_acc_dtype = _probe_fc_dtype()

  # One-time weight preprocessing (hoisted out of the per-call forward).
  prepare = jax.jit(functools.partial(prepare_params, w_dtype=fc_dtype))
  prepared = jax.block_until_ready(prepare(params))

  fwd = jax.jit(functools.partial(alexnet_owt_bn_forward,
                                  num_classes=num_classes,
                                  w_dtype=fc_dtype, acc_dtype=fc_acc_dtype))
  out = jax.block_until_ready(fwd(prepared, x))

  assert out.shape == (batch, num_classes)
  assert bool(jnp.all(jnp.isfinite(out)))
  # log-softmax rows should (approximately) sum to 1 in prob space
  assert bool(jnp.all(jnp.abs(jnp.sum(jnp.exp(out), axis=1) - 1.0) < 1e-3))
  # TODO(synk): training-mode BatchNorm statistics and the straight-through
  # estimator backward of Binarize* are out of scope (inference forward only).
  print("KERNEL_OK")
</pallas_src>

<mosaic_0001>
module attributes {stable_mosaic.version = 11 : i64} {
  func.func @k(%arg0: memref<2x512xi8, #tpu.memory_space<vmem>>, %arg1: memref<512x256xi8, #tpu.memory_space<vmem>>, %arg2: memref<2x256xf32, #tpu.memory_space<vmem>>) attributes {dimension_semantics = [], scalar_prefetch = 0 : i64, scratch_operands = 0 : i64, tpu.core_type = #tpu.core_type<tc>} {
    %c0 = arith.constant 0 : index
    %c0_0 = arith.constant 0 : index
    %0 = vector.load %arg0[%c0, %c0_0] : memref<2x512xi8, #tpu.memory_space<vmem>>, vector<2x512xi8>
    %c0_1 = arith.constant 0 : index
    %c0_2 = arith.constant 0 : index
    %1 = vector.load %arg1[%c0_1, %c0_2] : memref<512x256xi8, #tpu.memory_space<vmem>>, vector<512x256xi8>
    %cst = arith.constant dense<0> : vector<2x256xi32>
    %2 = tpu.matmul %0, %1, %cst {dimension_numbers = #tpu.dot_dimension_numbers<[1], [0], [0], [1], [0, 0, 1, 1], [], []>} : vector<2x512xi8>, vector<512x256xi8>, vector<2x256xi32> -> vector<2x256xi32>
    %3 = arith.sitofp %2 : vector<2x256xi32> to vector<2x256xf32>
    %c0_3 = arith.constant 0 : index
    %c0_4 = arith.constant 0 : index
    %4 = vector.load %arg2[%c0_3, %c0_4] : memref<2x256xf32, #tpu.memory_space<vmem>>, vector<2x256xf32>
    tpu.vector_store %arg2[%c0_3, %c0_4], %3 {strides = array<i32>} : memref<2x256xf32, #tpu.memory_space<vmem>>, vector<2x256xf32>,
    return
  }
}

module attributes {stable_mosaic.version = 11 : i64} {
  func.func @k(%arg0: memref<2x512xf8E4M3FN, #tpu.memory_space<vmem>>, %arg1: memref<512x256xf8E4M3FN, #tpu.memory_space<vmem>>, %arg2: memref<2x256xf32, #tpu.memory_space<vmem>>) attributes {dimension_semantics = [], scalar_prefetch = 0 : i64, scratch_operands = 0 : i64, tpu.core_type = #tpu.core_type<tc>} {
    %c0 = arith.constant 0 : index
    %c0_0 = arith.constant 0 : index
    %0 = vector.load %arg0[%c0, %c0_0] : memref<2x512xf8E4M3FN, #tpu.memory_space<vmem>>, vector<2x512xf8E4M3FN>
    %c0_1 = arith.constant 0 : index
    %c0_2 = arith.constant 0 : index
    %1 = vector.load %arg1[%c0_1, %c0_2] : memref<512x256xf8E4M3FN, #tpu.memory_space<vmem>>, vector<512x256xf8E4M3FN>
    %cst = arith.constant dense<0.000000e+00> : vector<2x256xf32>
    %2 = tpu.matmul %0, %1, %cst {dimension_numbers = #tpu.dot_dimension_numbers<[1], [0], [0], [1], [0, 0, 1, 1], [], []>} : vector<2x512xf8E4M3FN>, vector<512x256xf8E4M3FN>, vector<2x256xf32> -> vector<2x256xf32>
    %c0_3 = arith.constant 0 : index
    %c0_4 = arith.constant 0 : index
    %3 = vector.load %arg2[%c0_3, %c0_4] : memref<2x256xf32, #tpu.memory_space<vmem>>, vector<2x256xf32>
    tpu.vector_store %arg2[%c0_3, %c0_4], %2 {strides = array<i32>} : memref<2x256xf32, #tpu.memory_space<vmem>>, vector<2x256xf32>,
    return
  }
}

</mosaic_0001>

<llo_original>
// kernel: tpu_custom_call.1
$region0: #{tpu_custom_call.1}
  #allocation0 [shape = 'u32[]', space=smem, size = 0x4, offset = 0x4, fixed_abs, tag = 'smem constant byte address 0x4 - core index']
  #allocation1 [shape = 'u32[144,128]{1,0:T(1,128)}', space=vmem, size = 0x12000, scoped, tag = 'internal scratch']
  %s0 = inlined_call_operand.hbm [shape: s8[2,512], index: 0, kind: input, shape index: {}]
  %s1 = inlined_call_operand.hbm [shape: s8[512,256], index: 1, kind: input, shape index: {}]
  %s2 = inlined_call_operand.hbm [shape: f32[2,256], index: 2, kind: output, shape index: {}]
  %s3 = sld [smem:[#allocation0]]
  $region26: #{tpu_custom_call.1} parent=0
    _
  %s5 = ssub.s32 1, %s3
  %s6 = scalar_select 0, %s5, %s3
  $region1: #{tpu_custom_call.1} parent=0
    #allocation2 [shape = 'u8[2048]{0}', space=vmem, size = 0x800, scoped, tag = 'input window, operand 0, single buffered']
    #allocation3 [shape = 's32[1]{0}', space=sflag, size = 0x4, scoped, tag = 'scoped memory for tpu_custom_call.1']
    #allocation4 [shape = 's32[1]{0}', space=sflag, size = 0x4, scoped, tag = 'scoped memory for tpu_custom_call.1']
    #allocation5 [shape = 'u8[131072]{0}', space=vmem, size = 0x20000, scoped, tag = 'input window, operand 1, single buffered']
    #allocation6 [shape = 's32[1]{0}', space=sflag, size = 0x4, scoped, tag = 'scoped memory for tpu_custom_call.1']
    #allocation7 [shape = 'u8[2048]{0}', space=vmem, size = 0x800, scoped, tag = 'output window, operand 0, single buffered']
    %7 = vsyncpa [#allocation3], 0
    %8 = vsyncpa [#allocation6], 0
    %9 = vsyncpa [#allocation4], 0
    // Predicated region
    $region2: #{tpu_custom_call.1} parent=1 // pred_check
      _
    $region3: #{tpu_custom_call.1} parent=1 // pred_check_branch
      %11 = sbr.rel (0) target = $region5
    $region4: #{tpu_custom_call.1} parent=1 // pred_region
      %s13 = ssub.s32 64, 64
      %14 = vsyncadd [#allocation3], %s13
      %s16 = sshll.u32 [#allocation2], 4
      %s17 = int_to_ptr.vmem [resolvable:$true] %s16
      %19 = dma.hbm_to_vmem [thread:$0]  %s0, 64, %s17, [#allocation3]
    $region5: #{tpu_custom_call.1} parent=1 // pred_fallthru
      _
    // Predicated region
    $region6: #{tpu_custom_call.1} parent=1 // pred_check
      _
    $region7: #{tpu_custom_call.1} parent=1 // pred_check_branch
      %21 = sbr.rel (0) target = $region9
    $region8: #{tpu_custom_call.1} parent=1 // pred_region
      %s23 = ssub.s32 4096, 4096
      %24 = vsyncadd [#allocation6], %s23
      %s25 = sshll.u32 [#allocation5], 4
      %s26 = int_to_ptr.vmem [resolvable:$true] %s25
      %31 = dma.hbm_to_vmem [thread:$0]  %s1, 4096, %s26, [#allocation6], 256, 256, 16
    $region9: #{tpu_custom_call.1} parent=1 // pred_fallthru
      _
    // Predicated region
    $region10: #{tpu_custom_call.1} parent=1 // pred_check
      _
    $region11: #{tpu_custom_call.1} parent=1 // pred_check_branch
      %33 = sbr.rel (0) target = $region13
    $region12: #{tpu_custom_call.1} parent=1 // pred_region
      %34 = dma.done [#allocation3], 64
    $region13: #{tpu_custom_call.1} parent=1 // pred_fallthru
      _
    // Predicated region
    $region14: #{tpu_custom_call.1} parent=1 // pred_check
      _
    $region15: #{tpu_custom_call.1} parent=1 // pred_check_branch
      %36 = sbr.rel (0) target = $region17
    $region16: #{tpu_custom_call.1} parent=1 // pred_region
      %37 = dma.done [#allocation6], 4096
    $region17: #{tpu_custom_call.1} parent=1 // pred_fallthru
      _
    %v38 = vld [vmem:[#allocation2] sm:$0xf]
    %v39 = vld [vmem:[#allocation5] sm:$0xff]
    %v40 = vld [vmem:[#allocation5 + $0x8] sm:$0xff]
    %v41 = vld [vmem:[#allocation5 + $0x10] sm:$0xff]
    %v42 = vld [vmem:[#allocation5 + $0x18] sm:$0xff]
    %v43 = vld [vmem:[#allocation5 + $0x20] sm:$0xff]
    %v44 = vld [vmem:[#allocation5 + $0x28] sm:$0xff]
    %v45 = vld [vmem:[#allocation5 + $0x30] sm:$0xff]
    %v46 = vld [vmem:[#allocation5 + $0x38] sm:$0xff]
    %v47 = vld [vmem:[#allocation5 + $0x40] sm:$0xff]
    %v48 = vld [vmem:[#allocation5 + $0x48] sm:$0xff]
    %v49 = vld [vmem:[#allocation5 + $0x50] sm:$0xff]
    %v50 = vld [vmem:[#allocation5 + $0x58] sm:$0xff]
    %v51 = vld [vmem:[#allocation5 + $0x60] sm:$0xff]
    %v52 = vld [vmem:[#allocation5 + $0x68] sm:$0xff]
    %v53 = vld [vmem:[#allocation5 + $0x70] sm:$0xff]
    %v54 = vld [vmem:[#allocation5 + $0x78] sm:$0xff]
    %v55 = vld [vmem:[#allocation5 + $0x80] sm:$0xff]
    %v56 = vld [vmem:[#allocation5 + $0x88] sm:$0xff]
    %v57 = vld [vmem:[#allocation5 + $0x90] sm:$0xff]
    %v58 = vld [vmem:[#allocation5 + $0x98] sm:$0xff]
    %v59 = vld [vmem:[#allocation5 + $0xa0] sm:$0xff]
    %v60 = vld [vmem:[#allocation5 + $0xa8] sm:$0xff]
    %v61 = vld [vmem:[#allocation5 + $0xb0] sm:$0xff]
    %v62 = vld [vmem:[#allocation5 + $0xb8] sm:$0xff]
    %v63 = vld [vmem:[#allocation5 + $0xc0] sm:$0xff]
    %v64 = vld [vmem:[#allocation5 + $0xc8] sm:$0xff]
    %v65 = vld [vmem:[#allocation5 + $0xd0] sm:$0xff]
    %v66 = vld [vmem:[#allocation5 + $0xd8] sm:$0xff]
    %v67 = vld [vmem:[#allocation5 + $0xe0] sm:$0xff]
    %v68 = vld [vmem:[#allocation5 + $0xe8] sm:$0xff]
    %v69 = vld [vmem:[#allocation5 + $0xf0] sm:$0xff]
    %v70 = vld [vmem:[#allocation5 + $0xf8] sm:$0xff]
    %v72 = vunpack.c.l.s4 1966171168
    %v73 = vunpack.c.0.s8 %v72
    %v74 = vlaneseq
    %v75 = vshrl.u32 %v74, 7
    %v76 = vsub.s32 %v73, %v75
    %v77 = vrot.slane %v38, %v76
    %v78 = vcombine.high %v77, %v77
    %v80 = vunpack.c.l.s4 1966171168
    %v81 = vunpack.c.0.s8 %v80
    %v82 = vlaneseq
    %v83 = vshrl.u32 %v82, 7
    %v84 = vsub.s32 %v81, %v83
    %v85 = vrot.slane %v77, %v84
    %v87 = vunpack.c.l.s4 1966171168
    %v88 = vunpack.c.0.s8 %v87
    %v89 = vlaneseq
    %v90 = vshrl.u32 %v89, 7
    %v91 = vsub.s32 %v88, %v90
    %v92 = vrot.slane %v78, %v91
    %v93 = vcombine.high %v85, %v85
    %v94 = vcombine.high %v92, %v92
    %95 = vmatprep.subr.s8.mxu0 %v46
    %96 = vmatpush1.s8.msra.mxu0 %v45
    %97 = vmatprep.subr.s8.mxu0 %v44
    %98 = vmatpush1.s8.msra.mxu0 %v43
    %99 = vmatprep.subr.s8.mxu0 %v42
    %100 = vmatpush1.s8.msra.mxu0 %v41
    %101 = vmatprep.subr.s8.mxu0 %v40
    %102 = vmatpush1.s8.msra.mxu0 %v39
    %103 = vmatprep.subr.s8.mxu0 %v54
    %104 = vmatpush2.s8.msra.mxu0 %v53
    %105 = vmatprep.subr.s8.mxu0 %v52
    %106 = vmatpush2.s8.msra.mxu0 %v51
    %107 = vmatprep.subr.s8.mxu0 %v50
    %108 = vmatpush2.s8.msra.mxu0 %v49
    %109 = vmatprep.subr.s8.mxu0 %v48
    %110 = vmatpush2.s8.msra.mxu0 %v47
    %111 = vmatprep.mubr.s8.mxu0 %v92
    %112 = vmatmul.mubr.s8.gmra.mxu0 %v85
    %v113 = vpop.s32.mrf.mxu0
    %v114 = vadd.s32 0, %v113
    %v115 = vpop.s32.mrf.mxu0
    %v116 = vadd.s32 0, %v115
    %v117 = vpop.s32.mrf.mxu0
    %v118 = vpop.s32.mrf.mxu0
    %v119 = vpop.s32.mrf.mxu0
    %v120 = vpop.s32.mrf.mxu0
    %v121 = vpop.s32.mrf.mxu0
    %v122 = vpop.s32.mrf.mxu0
    %123 = vdwg.mxu0
    %124 = vmatprep.subr.s8.mxu0 %v62
    %125 = vmatpush1.s8.msra.mxu0 %v61
    %126 = vmatprep.subr.s8.mxu0 %v60
    %127 = vmatpush1.s8.msra.mxu0 %v59
    %128 = vmatprep.subr.s8.mxu0 %v58
    %129 = vmatpush1.s8.msra.mxu0 %v57
    %130 = vmatprep.subr.s8.mxu0 %v56
    %131 = vmatpush1.s8.msra.mxu0 %v55
    %132 = vmatprep.subr.s8.mxu0 %v70
    %133 = vmatpush2.s8.msra.mxu0 %v69
    %134 = vmatprep.subr.s8.mxu0 %v68
    %135 = vmatpush2.s8.msra.mxu0 %v67
    %136 = vmatprep.subr.s8.mxu0 %v66
    %137 = vmatpush2.s8.msra.mxu0 %v65
    %138 = vmatprep.subr.s8.mxu0 %v64
    %139 = vmatpush2.s8.msra.mxu0 %v63
    %140 = vmatprep.mubr.s8.mxu0 %v94
    %141 = vmatmul.mubr.s8.gmra.mxu0 %v93
    %v142 = vpop.s32.mrf.mxu0
    %v143 = vadd.s32 %v114, %v142
    %v144 = vpop.s32.mrf.mxu0
    %v145 = vadd.s32 %v116, %v144
    %v146 = vpop.s32.mrf.mxu0
    %v147 = vpop.s32.mrf.mxu0
    %v148 = vpop.s32.mrf.mxu0
    %v149 = vpop.s32.mrf.mxu0
    %v150 = vpop.s32.mrf.mxu0
    %v151 = vpop.s32.mrf.mxu0
    %152 = vdwg.mxu0
    %v153 = vcvt.s32.f32 %v143
    %v154 = vcvt.s32.f32 %v145
    %v157 = vcombine.low %v153, %v154
    %v159 = vunpack.c.l.s4 1983009808
    %v160 = vunpack.c.0.s8 %v159
    %v161 = vlaneseq
    %v162 = vshrl.u32 %v161, 7
    %v163 = vsub.s32 %v160, %v162
    %v164 = vrot.slane %v157, %v163
    %166 = vst [vmem:[#allocation7] sm:$0xf] %v164
    // Predicated region
    $region18: #{tpu_custom_call.1} parent=1 // pred_check
      _
    $region19: #{tpu_custom_call.1} parent=1 // pred_check_branch
      %168 = sbr.rel (0) target = $region21
    $region20: #{tpu_custom_call.1} parent=1 // pred_region
      %s170 = ssub.s32 64, 64
      %171 = vsyncadd [#allocation4], %s170
      %s173 = sshll.u32 [#allocation7], 4
      %s174 = int_to_ptr.vmem [resolvable:$true] %s173
      %176 = dma.vmem_to_hbm [thread:$0]  %s174, 64, %s2, [#allocation4]
    $region21: #{tpu_custom_call.1} parent=1 // pred_fallthru
      _
    // Predicated region
    $region22: #{tpu_custom_call.1} parent=1 // pred_check
      _
    $region23: #{tpu_custom_call.1} parent=1 // pred_check_branch
      %178 = sbr.rel (0) target = $region25
    $region24: #{tpu_custom_call.1} parent=1 // pred_region
      %179 = dma.done [#allocation4], 64
    $region25: #{tpu_custom_call.1} parent=1 // pred_fallthru
      _
    %180 = vsyncpa [#allocation3], 1
    %181 = vsyncpa [#allocation6], 1
    %182 = vsyncpa [#allocation4], 1

// kernel: tpu_custom_call.1
$region0: #{tpu_custom_call.1}
  #allocation0 [shape = 'u32[]', space=smem, size = 0x4, offset = 0x4, fixed_abs, tag = 'smem constant byte address 0x4 - core index']
  #allocation1 [shape = 'u32[144,128]{1,0:T(1,128)}', space=vmem, size = 0x12000, scoped, tag = 'internal scratch']
  %s0 = inlined_call_operand.hbm [shape: f8e4m3fn[2,512], index: 0, kind: input, shape index: {}]
  %s1 = inlined_call_operand.hbm [shape: f8e4m3fn[512,256], index: 1, kind: input, shape index: {}]
  %s2 = inlined_call_operand.hbm [shape: f32[2,256], index: 2, kind: output, shape index: {}]
  %s3 = sld [smem:[#allocation0]]
  $region26: #{tpu_custom_call.1} parent=0
    _
  %s5 = ssub.s32 1, %s3
  %s6 = scalar_select 0, %s5, %s3
  $region1: #{tpu_custom_call.1} parent=0
    #allocation2 [shape = 'u8[2048]{0}', space=vmem, size = 0x800, scoped, tag = 'input window, operand 0, single buffered']
    #allocation3 [shape = 's32[1]{0}', space=sflag, size = 0x4, scoped, tag = 'scoped memory for tpu_custom_call.1']
    #allocation4 [shape = 's32[1]{0}', space=sflag, size = 0x4, scoped, tag = 'scoped memory for tpu_custom_call.1']
    #allocation5 [shape = 'u8[131072]{0}', space=vmem, size = 0x20000, scoped, tag = 'input window, operand 1, single buffered']
    #allocation6 [shape = 's32[1]{0}', space=sflag, size = 0x4, scoped, tag = 'scoped memory for tpu_custom_call.1']
    #allocation7 [shape = 'u8[2048]{0}', space=vmem, size = 0x800, scoped, tag = 'output window, operand 0, single buffered']
    %7 = vsyncpa [#allocation3], 0
    %8 = vsyncpa [#allocation6], 0
    %9 = vsyncpa [#allocation4], 0
    // Predicated region
    $region2: #{tpu_custom_call.1} parent=1 // pred_check
      _
    $region3: #{tpu_custom_call.1} parent=1 // pred_check_branch
      %11 = sbr.rel (0) target = $region5
    $region4: #{tpu_custom_call.1} parent=1 // pred_region
      %s13 = ssub.s32 64, 64
      %14 = vsyncadd [#allocation3], %s13
      %s16 = sshll.u32 [#allocation2], 4
      %s17 = int_to_ptr.vmem [resolvable:$true] %s16
      %19 = dma.hbm_to_vmem [thread:$0]  %s0, 64, %s17, [#allocation3]
    $region5: #{tpu_custom_call.1} parent=1 // pred_fallthru
      _
    // Predicated region
    $region6: #{tpu_custom_call.1} parent=1 // pred_check
      _
    $region7: #{tpu_custom_call.1} parent=1 // pred_check_branch
      %21 = sbr.rel (0) target = $region9
    $region8: #{tpu_custom_call.1} parent=1 // pred_region
      %s23 = ssub.s32 4096, 4096
      %24 = vsyncadd [#allocation6], %s23
      %s25 = sshll.u32 [#allocation5], 4
      %s26 = int_to_ptr.vmem [resolvable:$true] %s25
      %31 = dma.hbm_to_vmem [thread:$0]  %s1, 4096, %s26, [#allocation6], 256, 256, 16
    $region9: #{tpu_custom_call.1} parent=1 // pred_fallthru
      _
    // Predicated region
    $region10: #{tpu_custom_call.1} parent=1 // pred_check
      _
    $region11: #{tpu_custom_call.1} parent=1 // pred_check_branch
      %33 = sbr.rel (0) target = $region13
    $region12: #{tpu_custom_call.1} parent=1 // pred_region
      %34 = dma.done [#allocation3], 64
    $region13: #{tpu_custom_call.1} parent=1 // pred_fallthru
      _
    // Predicated region
    $region14: #{tpu_custom_call.1} parent=1 // pred_check
      _
    $region15: #{tpu_custom_call.1} parent=1 // pred_check_branch
      %36 = sbr.rel (0) target = $region17
    $region16: #{tpu_custom_call.1} parent=1 // pred_region
      %37 = dma.done [#allocation6], 4096
    $region17: #{tpu_custom_call.1} parent=1 // pred_fallthru
      _
    %v38 = vld [vmem:[#allocation2] sm:$0xf]
    %v39 = vld [vmem:[#allocation5] sm:$0xff]
    %v40 = vld [vmem:[#allocation5 + $0x8] sm:$0xff]
    %v41 = vld [vmem:[#allocation5 + $0x10] sm:$0xff]
    %v42 = vld [vmem:[#allocation5 + $0x18] sm:$0xff]
    %v43 = vld [vmem:[#allocation5 + $0x20] sm:$0xff]
    %v44 = vld [vmem:[#allocation5 + $0x28] sm:$0xff]
    %v45 = vld [vmem:[#allocation5 + $0x30] sm:$0xff]
    %v46 = vld [vmem:[#allocation5 + $0x38] sm:$0xff]
    %v47 = vld [vmem:[#allocation5 + $0x40] sm:$0xff]
    %v48 = vld [vmem:[#allocation5 + $0x48] sm:$0xff]
    %v49 = vld [vmem:[#allocation5 + $0x50] sm:$0xff]
    %v50 = vld [vmem:[#allocation5 + $0x58] sm:$0xff]
    %v51 = vld [vmem:[#allocation5 + $0x60] sm:$0xff]
    %v52 = vld [vmem:[#allocation5 + $0x68] sm:$0xff]
    %v53 = vld [vmem:[#allocation5 + $0x70] sm:$0xff]
    %v54 = vld [vmem:[#allocation5 + $0x78] sm:$0xff]
    %v55 = vld [vmem:[#allocation5 + $0x80] sm:$0xff]
    %v56 = vld [vmem:[#allocation5 + $0x88] sm:$0xff]
    %v57 = vld [vmem:[#allocation5 + $0x90] sm:$0xff]
    %v58 = vld [vmem:[#allocation5 + $0x98] sm:$0xff]
    %v59 = vld [vmem:[#allocation5 + $0xa0] sm:$0xff]
    %v60 = vld [vmem:[#allocation5 + $0xa8] sm:$0xff]
    %v61 = vld [vmem:[#allocation5 + $0xb0] sm:$0xff]
    %v62 = vld [vmem:[#allocation5 + $0xb8] sm:$0xff]
    %v63 = vld [vmem:[#allocation5 + $0xc0] sm:$0xff]
    %v64 = vld [vmem:[#allocation5 + $0xc8] sm:$0xff]
    %v65 = vld [vmem:[#allocation5 + $0xd0] sm:$0xff]
    %v66 = vld [vmem:[#allocation5 + $0xd8] sm:$0xff]
    %v67 = vld [vmem:[#allocation5 + $0xe0] sm:$0xff]
    %v68 = vld [vmem:[#allocation5 + $0xe8] sm:$0xff]
    %v69 = vld [vmem:[#allocation5 + $0xf0] sm:$0xff]
    %v70 = vld [vmem:[#allocation5 + $0xf8] sm:$0xff]
    %v73 = vunpack.c.l.s4 1966171168
    %v74 = vunpack.c.0.s8 %v73
    %v75 = vlaneseq
    %v76 = vshrl.u32 %v75, 7
    %v77 = vsub.s32 %v74, %v76
    %v78 = vrot.slane %v38, %v77
    %v79 = vcombine.high %v78, %v78
    %v81 = vunpack.c.l.s4 1966171168
    %v82 = vunpack.c.0.s8 %v81
    %v83 = vlaneseq
    %v84 = vshrl.u32 %v83, 7
    %v85 = vsub.s32 %v82, %v84
    %v86 = vrot.slane %v78, %v85
    %v88 = vunpack.c.l.s4 1966171168
    %v89 = vunpack.c.0.s8 %v88
    %v90 = vlaneseq
    %v91 = vshrl.u32 %v90, 7
    %v92 = vsub.s32 %v89, %v91
    %v93 = vrot.slane %v79, %v92
    %v94 = vcombine.high %v86, %v86
    %v95 = vcombine.high %v93, %v93
    %v100 = vxor.u32 %v46, 2155905152
    %vm101 = vnez %v100
    %v102 = vsel %vm101, %v46, 0
    %103 = vmatprep.subr.f8e4m3b11.bf16.mxu0 %v102
    %v104 = vxor.u32 %v45, 2155905152
    %vm105 = vnez %v104
    %v106 = vsel %vm105, %v45, 0
    %107 = vmatpush1.f8e4m3b11.bf16.msra.mxu0 %v106
    %v108 = vxor.u32 %v44, 2155905152
    %vm109 = vnez %v108
    %v110 = vsel %vm109, %v44, 0
    %111 = vmatprep.subr.f8e4m3b11.bf16.mxu0 %v110
    %v112 = vxor.u32 %v43, 2155905152
    %vm113 = vnez %v112
    %v114 = vsel %vm113, %v43, 0
    %115 = vmatpush1.f8e4m3b11.bf16.msra.mxu0 %v114
    %v116 = vxor.u32 %v42, 2155905152
    %vm117 = vnez %v116
    %v118 = vsel %vm117, %v42, 0
    %119 = vmatprep.subr.f8e4m3b11.bf16.mxu0 %v118
    %v120 = vxor.u32 %v41, 2155905152
    %vm121 = vnez %v120
    %v122 = vsel %vm121, %v41, 0
    %123 = vmatpush1.f8e4m3b11.bf16.msra.mxu0 %v122
    %v124 = vxor.u32 %v40, 2155905152
    %vm125 = vnez %v124
    %v126 = vsel %vm125, %v40, 0
    %127 = vmatprep.subr.f8e4m3b11.bf16.mxu0 %v126
    %v128 = vxor.u32 %v39, 2155905152
    %vm129 = vnez %v128
    %v130 = vsel %vm129, %v39, 0
    %131 = vmatpush1.f8e4m3b11.bf16.msra.mxu0 %v130
    %v132 = vxor.u32 %v54, 2155905152
    %vm133 = vnez %v132
    %v134 = vsel %vm133, %v54, 0
    %135 = vmatprep.subr.f8e4m3b11.bf16.mxu0 %v134
    %v136 = vxor.u32 %v53, 2155905152
    %vm137 = vnez %v136
    %v138 = vsel %vm137, %v53, 0
    %139 = vmatpush2.f8e4m3b11.bf16.msra.mxu0 %v138
    %v140 = vxor.u32 %v52, 2155905152
    %vm141 = vnez %v140
    %v142 = vsel %vm141, %v52, 0
    %143 = vmatprep.subr.f8e4m3b11.bf16.mxu0 %v142
    %v144 = vxor.u32 %v51, 2155905152
    %vm145 = vnez %v144
    %v146 = vsel %vm145, %v51, 0
    %147 = vmatpush2.f8e4m3b11.bf16.msra.mxu0 %v146
    %v148 = vxor.u32 %v50, 2155905152
    %vm149 = vnez %v148
    %v150 = vsel %vm149, %v50, 0
    %151 = vmatprep.subr.f8e4m3b11.bf16.mxu0 %v150
    %v152 = vxor.u32 %v49, 2155905152
    %vm153 = vnez %v152
    %v154 = vsel %vm153, %v49, 0
    %155 = vmatpush2.f8e4m3b11.bf16.msra.mxu0 %v154
    %v156 = vxor.u32 %v48, 2155905152
    %vm157 = vnez %v156
    %v158 = vsel %vm157, %v48, 0
    %159 = vmatprep.subr.f8e4m3b11.bf16.mxu0 %v158
    %v160 = vxor.u32 %v47, 2155905152
    %vm161 = vnez %v160
    %v162 = vsel %vm161, %v47, 0
    %163 = vmatpush2.f8e4m3b11.bf16.msra.mxu0 %v162
    %v164 = vxor.u32 %v93, 2155905152
    %vm165 = vnez %v164
    %v166 = vsel %vm165, %v93, 0
    %167 = vmatprep.mubr.f8e4m3b11.bf16.mxu0 %v166
    %v168 = vxor.u32 %v86, 2155905152
    %vm169 = vnez %v168
    %v170 = vsel %vm169, %v86, 0
    %171 = vmatmul.mubr.f8e4m3b11.bf16.gmra.mxu0 %v170
    %v172 = vpop.f32.mrf.mxu0
    %v173 = vmul.f32 %v172, 256.0
    %v174 = vadd.f32 0.0, %v173
    %v175 = vpop.f32.mrf.mxu0
    %v176 = vmul.f32 %v175, 256.0
    %v177 = vadd.f32 0.0, %v176
    %v178 = vpop.f32.mrf.mxu0
    %v179 = vpop.f32.mrf.mxu0
    %v180 = vpop.f32.mrf.mxu0
    %v181 = vpop.f32.mrf.mxu0
    %v182 = vpop.f32.mrf.mxu0
    %v183 = vpop.f32.mrf.mxu0
    %184 = vdwg.mxu0
    %v185 = vxor.u32 %v62, 2155905152
    %vm186 = vnez %v185
    %v187 = vsel %vm186, %v62, 0
    %188 = vmatprep.subr.f8e4m3b11.bf16.mxu0 %v187
    %v189 = vxor.u32 %v61, 2155905152
    %vm190 = vnez %v189
    %v191 = vsel %vm190, %v61, 0
    %192 = vmatpush1.f8e4m3b11.bf16.msra.mxu0 %v191
    %v193 = vxor.u32 %v60, 2155905152
    %vm194 = vnez %v193
    %v195 = vsel %vm194, %v60, 0
    %196 = vmatprep.subr.f8e4m3b11.bf16.mxu0 %v195
    %v197 = vxor.u32 %v59, 2155905152
    %vm198 = vnez %v197
    %v199 = vsel %vm198, %v59, 0
    %200 = vmatpush1.f8e4m3b11.bf16.msra.mxu0 %v199
    %v201 = vxor.u32 %v58, 2155905152
    %vm202 = vnez %v201
    %v203 = vsel %vm202, %v58, 0
    %204 = vmatprep.subr.f8e4m3b11.bf16.mxu0 %v203
    %v205 = vxor.u32 %v57, 2155905152
    %vm206 = vnez %v205
    %v207 = vsel %vm206, %v57, 0
    %208 = vmatpush1.f8e4m3b11.bf16.msra.mxu0 %v207
    %v209 = vxor.u32 %v56, 2155905152
    %vm210 = vnez %v209
    %v211 = vsel %vm210, %v56, 0
    %212 = vmatprep.subr.f8e4m3b11.bf16.mxu0 %v211
    %v213 = vxor.u32 %v55, 2155905152
    %vm214 = vnez %v213
    %v215 = vsel %vm214, %v55, 0
    %216 = vmatpush1.f8e4m3b11.bf16.msra.mxu0 %v215
    %v217 = vxor.u32 %v70, 2155905152
    %vm218 = vnez %v217
    %v219 = vsel %vm218, %v70, 0
    %220 = vmatprep.subr.f8e4m3b11.bf16.mxu0 %v219
    %v221 = vxor.u32 %v69, 2155905152
    %vm222 = vnez %v221
    %v223 = vsel %vm222, %v69, 0
    %224 = vmatpush2.f8e4m3b11.bf16.msra.mxu0 %v223
    %v225 = vxor.u32 %v68, 2155905152
    %vm226 = vnez %v225
    %v227 = vsel %vm226, %v68, 0
    %228 = vmatprep.subr.f8e4m3b11.bf16.mxu0 %v227
    %v229 = vxor.u32 %v67, 2155905152
    %vm230 = vnez %v229
    %v231 = vsel %vm230, %v67, 0
    %232 = vmatpush2.f8e4m3b11.bf16.msra.mxu0 %v231
    %v233 = vxor.u32 %v66, 2155905152
    %vm234 = vnez %v233
    %v235 = vsel %vm234, %v66, 0
    %236 = vmatprep.subr.f8e4m3b11.bf16.mxu0 %v235
    %v237 = vxor.u32 %v65, 2155905152
    %vm238 = vnez %v237
    %v239 = vsel %vm238, %v65, 0
    %240 = vmatpush2.f8e4m3b11.bf16.msra.mxu0 %v239
    %v241 = vxor.u32 %v64, 2155905152
    %vm242 = vnez %v241
    %v243 = vsel %vm242, %v64, 0
    %244 = vmatprep.subr.f8e4m3b11.bf16.mxu0 %v243
    %v245 = vxor.u32 %v63, 2155905152
    %vm246 = vnez %v245
    %v247 = vsel %vm246, %v63, 0
    %248 = vmatpush2.f8e4m3b11.bf16.msra.mxu0 %v247
    %v249 = vxor.u32 %v95, 2155905152
    %vm250 = vnez %v249
    %v251 = vsel %vm250, %v95, 0
    %252 = vmatprep.mubr.f8e4m3b11.bf16.mxu0 %v251
    %v253 = vxor.u32 %v94, 2155905152
    %vm254 = vnez %v253
    %v255 = vsel %vm254, %v94, 0
    %256 = vmatmul.mubr.f8e4m3b11.bf16.gmra.mxu0 %v255
    %v257 = vpop.f32.mrf.mxu0
    %v258 = vmul.f32 %v257, 256.0
    %v259 = vadd.f32 %v174, %v258
    %v260 = vpop.f32.mrf.mxu0
    %v261 = vmul.f32 %v260, 256.0
    %v262 = vadd.f32 %v177, %v261
    %v263 = vpop.f32.mrf.mxu0
    %v264 = vpop.f32.mrf.mxu0
    %v265 = vpop.f32.mrf.mxu0
    %v266 = vpop.f32.mrf.mxu0
    %v267 = vpop.f32.mrf.mxu0
    %v268 = vpop.f32.mrf.mxu0
    %269 = vdwg.mxu0
    %v272 = vcombine.low %v259, %v262
    %v274 = vunpack.c.l.s4 1983009808
    %v275 = vunpack.c.0.s8 %v274
    %v276 = vlaneseq
    %v277 = vshrl.u32 %v276, 7
    %v278 = vsub.s32 %v275, %v277
    %v279 = vrot.slane %v272, %v278
    %281 = vst [vmem:[#allocation7] sm:$0xf] %v279
    // Predicated region
    $region18: #{tpu_custom_call.1} parent=1 // pred_check
      _
    $region19: #{tpu_custom_call.1} parent=1 // pred_check_branch
      %283 = sbr.rel (0) target = $region21
    $region20: #{tpu_custom_call.1} parent=1 // pred_region
      %s285 = ssub.s32 64, 64
      %286 = vsyncadd [#allocation4], %s285
      %s288 = sshll.u32 [#allocation7], 4
      %s289 = int_to_ptr.vmem [resolvable:$true] %s288
      %291 = dma.vmem_to_hbm [thread:$0]  %s289, 64, %s2, [#allocation4]
    $region21: #{tpu_custom_call.1} parent=1 // pred_fallthru
      _
    // Predicated region
    $region22: #{tpu_custom_call.1} parent=1 // pred_check
      _
    $region23: #{tpu_custom_call.1} parent=1 // pred_check_branch
      %293 = sbr.rel (0) target = $region25
    $region24: #{tpu_custom_call.1} parent=1 // pred_region
      %294 = dma.done [#allocation4], 64
    $region25: #{tpu_custom_call.1} parent=1 // pred_fallthru
      _
    %295 = vsyncpa [#allocation3], 1
    %296 = vsyncpa [#allocation6], 1
    %297 = vsyncpa [#allocation4], 1

</llo_original>
